<compile_context>
chip_gen: v7x
topology: tpu7x:2x2x1
jax: 0.10.0
libtpu: 0.0.40
codegen_flags: <defaults>
</compile_context>

<pallas_src>
import jax
import jax.numpy as jnp
from jax.experimental import pallas as pl
from jax.experimental.pallas import tpu as pltpu

LANE = 128
SUBLANE = 8


def _round_up(n, m):
    return (n + m - 1) // m * m


def dqn_kernel(xT_ref, w1T_ref, b1_ref, w2T_ref, b2_ref, o_ref):
    # fc1 on the VPU: contraction dim (state_dim=2) is tiny, so two broadcast
    # outer-product FMAs beat an MXU pass.  Bias is the accumulator init.
    xT = xT_ref[...]                       # (state_dim, tb)   batch on lanes
    w1T = w1T_ref[...]                     # (Hp, state_dim)   Hp = 128
    Hp = w1T.shape[0]
    tb = xT.shape[1]
    hT = jnp.broadcast_to(b1_ref[...], (Hp, tb))     # (Hp, 1) -> (Hp, tb)
    for k in range(xT.shape[0]):           # unrolled at trace time (state_dim=2)
        hT = hT + w1T[:, k:k + 1] * xT[k:k + 1, :]
    hT = jnp.maximum(hT, 0.0)              # relu

    # fc2 on the MXU: (Ap=8, Hp=128) @ (Hp=128, tb) -> (8, tb) lane-dense block.
    outT = jnp.dot(w2T_ref[...], hT, preferred_element_type=jnp.float32)
    o_ref[...] = (outT + b2_ref[...]).astype(o_ref.dtype)


def prepare_dqn_params(w1, b1, w2, b2):
    """One-time prep (hoisted out of the per-call forward path): cast to f32,
    transpose to the batch-on-lanes layout, and zero-pad hidden -> 128 and
    action_dim -> 8.  Zero padding keeps the math exact (relu(0)=0, padded W2
    rows/cols and b2 entries are 0)."""
    state_dim, hidden = w1.shape
    action_dim = w2.shape[1]
    Hp = _round_up(hidden, LANE)
    Ap = _round_up(action_dim, SUBLANE)

    w1T = jnp.pad(w1.astype(jnp.float32).T, ((0, Hp - hidden), (0, 0)))          # (Hp, state_dim)
    b1c = jnp.pad(b1.reshape(-1, 1).astype(jnp.float32), ((0, Hp - hidden), (0, 0)))  # (Hp, 1)
    w2T = jnp.pad(w2.astype(jnp.float32).T,
                  ((0, Ap - action_dim), (0, Hp - hidden)))                       # (Ap, Hp)
    b2c = jnp.pad(b2.reshape(-1, 1).astype(jnp.float32), ((0, Ap - action_dim), (0, 0)))  # (Ap, 1)
    return dict(w1T=w1T, b1c=b1c, w2T=w2T, b2c=b2c,
                state_dim=state_dim, action_dim=action_dim)


def _choose_batch_tile(B, max_batch_tile):
    """Batch sits on the lane axis, so tiles are multiples of 128.  Give the
    grid >= 2 steps whenever there are >= 2 lane-blocks (v7x megacore), and cap
    the tile for very large batches on single-TC chips."""
    Bp0 = _round_up(max(B, 1), LANE)
    blocks = Bp0 // LANE
    max_blocks = max(1, max_batch_tile // LANE)
    if blocks >= 2:
        tiles = max(2, pl.cdiv(blocks, max_blocks))
        tb_blocks = pl.cdiv(blocks, tiles)
    else:
        tb_blocks = 1
    tb = tb_blocks * LANE
    grid = pl.cdiv(Bp0, tb)
    Bp = grid * tb
    return tb, Bp, grid


def dqn_forward(x, params, *, max_batch_tile=2048):
    """x: [B, state_dim]; params from prepare_dqn_params().
    Returns [B, action_dim] == relu(x @ W1 + b1) @ W2 + b2."""
    w1T, b1c, w2T, b2c = params["w1T"], params["b1c"], params["w2T"], params["b2c"]
    action_dim = params["action_dim"]
    B, state_dim = x.shape
    Hp = w1T.shape[0]
    Ap = w2T.shape[0]

    tb, Bp, grid = _choose_batch_tile(B, max_batch_tile)

    # Only the tiny x (B x 2 f32) is transposed/padded per call.
    xT = jnp.pad(x.astype(jnp.float32).T, ((0, 0), (0, Bp - B)))   # (state_dim, Bp)

    outT = pl.pallas_call(
        dqn_kernel,
        out_shape=jax.ShapeDtypeStruct((Ap, Bp), jnp.float32),
        grid_spec=pltpu.PrefetchScalarGridSpec(
            num_scalar_prefetch=0,
            grid=(grid,),
            in_specs=[
                pl.BlockSpec((state_dim, tb), lambda i: (0, i)),   # batch tile (lanes)
                pl.BlockSpec((Hp, state_dim), lambda i: (0, 0)),   # resident
                pl.BlockSpec((Hp, 1), lambda i: (0, 0)),           # resident
                pl.BlockSpec((Ap, Hp), lambda i: (0, 0)),          # resident
                pl.BlockSpec((Ap, 1), lambda i: (0, 0)),           # resident
            ],
            out_specs=pl.BlockSpec((Ap, tb), lambda i: (0, i)),
        ),
        compiler_params=pltpu.CompilerParams(
            dimension_semantics=("parallel",),   # v7x: split batch tiles across TCs
        ),
    )(xT, w1T, b1c, w2T, b2c)

    # TODO(synk): if only greedy actions are needed, fuse argmax into the kernel
    # epilogue and emit int32 per row; the module spec returns Q-values, so we
    # keep them.
    return outT[:action_dim, :B].T


def init_params(key, state_dim, hidden, action_dim):
    # Mimic nn.Linear default init: U(-1/sqrt(fan_in), 1/sqrt(fan_in)).
    k1, k2, k3, k4 = jax.random.split(key, 4)
    bound1 = 1.0 / jnp.sqrt(state_dim)
    bound2 = 1.0 / jnp.sqrt(hidden)
    w1 = jax.random.uniform(k1, (state_dim, hidden), jnp.float32, -bound1, bound1)
    b1 = jax.random.uniform(k2, (hidden,), jnp.float32, -bound1, bound1)
    w2 = jax.random.uniform(k3, (hidden, action_dim), jnp.float32, -bound2, bound2)
    b2 = jax.random.uniform(k4, (action_dim,), jnp.float32, -bound2, bound2)
    return w1, b1, w2, b2


if __name__ == "__main__":
    STATE_DIM = 2      # MountainCar-v0 observation dim
    ACTION_DIM = 3     # MountainCar-v0 action count
    HIDDEN = 100

    key = jax.random.PRNGKey(0)
    kx, kx2, kp = jax.random.split(key, 3)
    w1, b1, w2, b2 = init_params(kp, STATE_DIM, HIDDEN, ACTION_DIM)

    # One-time parameter prep (padding/transpose hoisted out of the forward path).
    params = prepare_dqn_params(w1, b1, w2, b2)

    def ref_fwd(x):
        return jnp.maximum(x @ w1 + b1[None, :], 0.0) @ w2 + b2[None, :]

    # Small batch (single grid step, Bp = 128)
    x_small = jax.random.normal(kx, (8, STATE_DIM), jnp.float32)
    out_small = dqn_forward(x_small, params)
    jax.block_until_ready(out_small)
    assert out_small.shape == (8, ACTION_DIM)
    assert jnp.allclose(out_small, ref_fwd(x_small), atol=1e-5, rtol=1e-5)

    # Larger non-multiple-of-128 batch exercising the tiled (grid=2) batch axis
    x_big = jax.random.normal(kx2, (300, STATE_DIM), jnp.float32)
    out_big = dqn_forward(x_big, params)
    jax.block_until_ready(out_big)
    assert out_big.shape == (300, ACTION_DIM)
    assert jnp.allclose(out_big, ref_fwd(x_big), atol=1e-5, rtol=1e-5)

    print("KERNEL_OK")
</pallas_src>

<mosaic_0001>
module attributes {stable_mosaic.version = 11 : i64} {
  func.func @dqn_kernel(%arg0: i32, %arg1: memref<2x128xf32, #tpu.memory_space<vmem>>, %arg2: memref<128x2xf32, #tpu.memory_space<vmem>>, %arg3: memref<128x1xf32, #tpu.memory_space<vmem>>, %arg4: memref<8x128xf32, #tpu.memory_space<vmem>>, %arg5: memref<8x1xf32, #tpu.memory_space<vmem>>, %arg6: memref<8x128xf32, #tpu.memory_space<vmem>>) attributes {dimension_semantics = [#tpu.dimension_semantics<parallel>], iteration_bounds = array<i64: 1>, scalar_prefetch = 0 : i64, scratch_operands = 0 : i64, tpu.core_type = #tpu.core_type<tc>, window_params = [{transform_indices = @transform_0, window_bounds = array<i64: 2, 128>}, {pipeline_mode = #tpu.pipeline_mode<synchronous>, transform_indices = @transform_1, window_bounds = array<i64: 128, 2>}, {pipeline_mode = #tpu.pipeline_mode<synchronous>, transform_indices = @transform_2, window_bounds = array<i64: 128, 1>}, {pipeline_mode = #tpu.pipeline_mode<synchronous>, transform_indices = @transform_3, window_bounds = array<i64: 8, 128>}, {pipeline_mode = #tpu.pipeline_mode<synchronous>, transform_indices = @transform_4, window_bounds = array<i64: 8, 1>}, {transform_indices = @transform_5, window_bounds = array<i64: 8, 128>}]} {
    %c0 = arith.constant 0 : index
    %c0_0 = arith.constant 0 : index
    %0 = vector.load %arg1[%c0, %c0_0] : memref<2x128xf32, #tpu.memory_space<vmem>>, vector<2x128xf32>
    %c0_1 = arith.constant 0 : index
    %c0_2 = arith.constant 0 : index
    %1 = vector.load %arg2[%c0_1, %c0_2] : memref<128x2xf32, #tpu.memory_space<vmem>>, vector<128x2xf32>
    %c0_3 = arith.constant 0 : index
    %c0_4 = arith.constant 0 : index
    %2 = vector.load %arg3[%c0_3, %c0_4] : memref<128x1xf32, #tpu.memory_space<vmem>>, vector<128x1xf32>
    %3 = vector.shape_cast %2 : vector<128x1xf32> to vector<128x1xf32>
    %4 = vector.broadcast %3 : vector<128x1xf32> to vector<128x128xf32>
    %5 = vector.extract_strided_slice %1 {offsets = [0, 0], sizes = [128, 1], strides = [1, 1]} : vector<128x2xf32> to vector<128x1xf32>
    %6 = vector.extract_strided_slice %0 {offsets = [0, 0], sizes = [1, 128], strides = [1, 1]} : vector<2x128xf32> to vector<1x128xf32>
    %7 = vector.broadcast %5 : vector<128x1xf32> to vector<128x128xf32>
    %8 = vector.broadcast %6 : vector<1x128xf32> to vector<128x128xf32>
    %9 = arith.mulf %7, %8 : vector<128x128xf32>
    %10 = arith.addf %4, %9 : vector<128x128xf32>
    %11 = vector.extract_strided_slice %1 {offsets = [0, 1], sizes = [128, 1], strides = [1, 1]} : vector<128x2xf32> to vector<128x1xf32>
    %12 = vector.extract_strided_slice %0 {offsets = [1, 0], sizes = [1, 128], strides = [1, 1]} : vector<2x128xf32> to vector<1x128xf32>
    %13 = vector.broadcast %11 : vector<128x1xf32> to vector<128x128xf32>
    %14 = vector.broadcast %12 : vector<1x128xf32> to vector<128x128xf32>
    %15 = arith.mulf %13, %14 : vector<128x128xf32>
    %16 = arith.addf %10, %15 : vector<128x128xf32>
    %cst = arith.constant 0.000000e+00 : f32
    %17 = vector.broadcast %cst : f32 to vector<128x128xf32>
    %18 = arith.maximumf %16, %17 : vector<128x128xf32>
    %c0_5 = arith.constant 0 : index
    %c0_6 = arith.constant 0 : index
    %19 = vector.load %arg4[%c0_5, %c0_6] : memref<8x128xf32, #tpu.memory_space<vmem>>, vector<8x128xf32>
    %cst_7 = arith.constant dense<0.000000e+00> : vector<8x128xf32>
    %20 = tpu.matmul %19, %18, %cst_7 {dimension_numbers = #tpu.dot_dimension_numbers<[1], [0], [0], [1], [0, 0, 1, 1], [], []>} : vector<8x128xf32>, vector<128x128xf32>, vector<8x128xf32> -> vector<8x128xf32>
    %c0_8 = arith.constant 0 : index
    %c0_9 = arith.constant 0 : index
    %21 = vector.load %arg5[%c0_8, %c0_9] : memref<8x1xf32, #tpu.memory_space<vmem>>, vector<8x1xf32>
    %22 = vector.broadcast %21 : vector<8x1xf32> to vector<8x128xf32>
    %23 = arith.addf %20, %22 : vector<8x128xf32>
    %c0_10 = arith.constant 0 : index
    %c0_11 = arith.constant 0 : index
    %24 = vector.load %arg6[%c0_10, %c0_11] : memref<8x128xf32, #tpu.memory_space<vmem>>, vector<8x128xf32>
    tpu.vector_store %arg6[%c0_10, %c0_11], %23 {strides = array<i32>} : memref<8x128xf32, #tpu.memory_space<vmem>>, vector<8x128xf32>,
    return
  }
  func.func @transform_0(%arg0: i32) -> (i32, i32) {
    %c0_i32 = arith.constant 0 : i32
    %c0_i32_0 = arith.constant 0 : i32
    return %c0_i32, %arg0 : i32, i32
  }
  func.func @transform_1(%arg0: i32) -> (i32, i32) {
    %c0_i32 = arith.constant 0 : i32
    %c0_i32_0 = arith.constant 0 : i32
    %c0_i32_1 = arith.constant 0 : i32
    return %c0_i32, %c0_i32_0 : i32, i32
  }
  func.func @transform_2(%arg0: i32) -> (i32, i32) {
    %c0_i32 = arith.constant 0 : i32
    %c0_i32_0 = arith.constant 0 : i32
    %c0_i32_1 = arith.constant 0 : i32
    return %c0_i32, %c0_i32_0 : i32, i32
  }
  func.func @transform_3(%arg0: i32) -> (i32, i32) {
    %c0_i32 = arith.constant 0 : i32
    %c0_i32_0 = arith.constant 0 : i32
    %c0_i32_1 = arith.constant 0 : i32
    return %c0_i32, %c0_i32_0 : i32, i32
  }
  func.func @transform_4(%arg0: i32) -> (i32, i32) {
    %c0_i32 = arith.constant 0 : i32
    %c0_i32_0 = arith.constant 0 : i32
    %c0_i32_1 = arith.constant 0 : i32
    return %c0_i32, %c0_i32_0 : i32, i32
  }
  func.func @transform_5(%arg0: i32) -> (i32, i32) {
    %c0_i32 = arith.constant 0 : i32
    %c0_i32_0 = arith.constant 0 : i32
    return %c0_i32, %arg0 : i32, i32
  }
}

</mosaic_0001>

<llo_original>
// kernel: tpu_custom_call.1
$region0: #{tpu_custom_call.1}
  #allocation0 [shape = 'u32[]', space=smem, size = 0x4, offset = 0x4, fixed_abs, tag = 'smem constant byte address 0x4 - core index']
  #allocation1 [shape = 'u32[144,128]{1,0:T(1,128)}', space=vmem, size = 0x12000, scoped, tag = 'internal scratch']
  %s0 = inlined_call_operand.vmem [shape: f32[2,128], index: 0, kind: input, shape index: {}]
  %s1 = inlined_call_operand.vmem [shape: f32[128,2], index: 1, kind: input, shape index: {}]
  %s2 = inlined_call_operand.vmem [shape: f32[128,1], index: 2, kind: input, shape index: {}]
  %s3 = inlined_call_operand.vmem [shape: f32[8,128], index: 3, kind: input, shape index: {}]
  %s4 = inlined_call_operand.vmem [shape: f32[8,1], index: 4, kind: input, shape index: {}]
  %s5 = inlined_call_operand.hbm [shape: f32[8,128], index: 5, kind: output, shape index: {}]
  %s6 = sld [smem:[#allocation0]]
  $region30: #{tpu_custom_call.1} parent=0
    _
  %s8 = ssub.s32 1, %s6
  %s9 = scalar_select 0, %s8, %s6
  $region1: #{tpu_custom_call.1} parent=0
    #allocation2 [shape = 'u8[4096]{0}', space=vmem, size = 0x1000, scoped, tag = 'output window, operand 0, single buffered']
    #allocation3 [shape = 's32[1]{0}', space=sflag, size = 0x4, scoped, tag = 'scoped memory for tpu_custom_call.1']
    %10 = vsyncpa [#allocation3], 0
    // Predicated region
    $region2: #{tpu_custom_call.1} parent=1 // pred_check
      _
    $region3: #{tpu_custom_call.1} parent=1 // pred_check_branch
      %12 = sbr.rel (0) target = $region5
    $region4: #{tpu_custom_call.1} parent=1 // pred_region
      _
    $region5: #{tpu_custom_call.1} parent=1 // pred_fallthru
      _
    // Predicated region
    $region6: #{tpu_custom_call.1} parent=1 // pred_check
      _
    $region7: #{tpu_custom_call.1} parent=1 // pred_check_branch
      %14 = sbr.rel (0) target = $region9
    $region8: #{tpu_custom_call.1} parent=1 // pred_region
      _
    $region9: #{tpu_custom_call.1} parent=1 // pred_fallthru
      _
    // Predicated region
    $region10: #{tpu_custom_call.1} parent=1 // pred_check
      _
    $region11: #{tpu_custom_call.1} parent=1 // pred_check_branch
      %16 = sbr.rel (0) target = $region13
    $region12: #{tpu_custom_call.1} parent=1 // pred_region
      _
    $region13: #{tpu_custom_call.1} parent=1 // pred_fallthru
      _
    // Predicated region
    $region14: #{tpu_custom_call.1} parent=1 // pred_check
      _
    $region15: #{tpu_custom_call.1} parent=1 // pred_check_branch
      %18 = sbr.rel (0) target = $region17
    $region16: #{tpu_custom_call.1} parent=1 // pred_region
      _
    $region17: #{tpu_custom_call.1} parent=1 // pred_fallthru
      _
    // Predicated region
    $region18: #{tpu_custom_call.1} parent=1 // pred_check
      _
    $region19: #{tpu_custom_call.1} parent=1 // pred_check_branch
      %20 = sbr.rel (0) target = $region21
    $region20: #{tpu_custom_call.1} parent=1 // pred_region
      _
    $region21: #{tpu_custom_call.1} parent=1 // pred_fallthru
      _
    %v21 = vld [vmem:[%s0] sm:$0x3]
    %v22 = vld [vmem:[%s1] sm:$0xff]
    %v23 = vld [vmem:[%s1 + $0x8] sm:$0xff]
    %v24 = vld [vmem:[%s1 + $0x10] sm:$0xff]
    %v25 = vld [vmem:[%s1 + $0x18] sm:$0xff]
    %v26 = vld [vmem:[%s1 + $0x20] sm:$0xff]
    %v27 = vld [vmem:[%s1 + $0x28] sm:$0xff]
    %v28 = vld [vmem:[%s1 + $0x30] sm:$0xff]
    %v29 = vld [vmem:[%s1 + $0x38] sm:$0xff]
    %v30 = vld [vmem:[%s1 + $0x40] sm:$0xff]
    %v31 = vld [vmem:[%s1 + $0x48] sm:$0xff]
    %v32 = vld [vmem:[%s1 + $0x50] sm:$0xff]
    %v33 = vld [vmem:[%s1 + $0x58] sm:$0xff]
    %v34 = vld [vmem:[%s1 + $0x60] sm:$0xff]
    %v35 = vld [vmem:[%s1 + $0x68] sm:$0xff]
    %v36 = vld [vmem:[%s1 + $0x70] sm:$0xff]
    %v37 = vld [vmem:[%s1 + $0x78] sm:$0xff]
    %v38 = vld [vmem:[%s2] sm:$0xff]
    %v39 = vld [vmem:[%s2 + $0x8] sm:$0xff]
    %v40 = vld [vmem:[%s2 + $0x10] sm:$0xff]
    %v41 = vld [vmem:[%s2 + $0x18] sm:$0xff]
    %v42 = vld [vmem:[%s2 + $0x20] sm:$0xff]
    %v43 = vld [vmem:[%s2 + $0x28] sm:$0xff]
    %v44 = vld [vmem:[%s2 + $0x30] sm:$0xff]
    %v45 = vld [vmem:[%s2 + $0x38] sm:$0xff]
    %v46 = vld [vmem:[%s2 + $0x40] sm:$0xff]
    %v47 = vld [vmem:[%s2 + $0x48] sm:$0xff]
    %v48 = vld [vmem:[%s2 + $0x50] sm:$0xff]
    %v49 = vld [vmem:[%s2 + $0x58] sm:$0xff]
    %v50 = vld [vmem:[%s2 + $0x60] sm:$0xff]
    %v51 = vld [vmem:[%s2 + $0x68] sm:$0xff]
    %v52 = vld [vmem:[%s2 + $0x70] sm:$0xff]
    %v53 = vld [vmem:[%s2 + $0x78] sm:$0xff]
    %55 = vset.pattern.permute.xlu0 0
    %56 = vperm.xlu0 %55, %v38
    %v57 = vpop.permute.xlu0 %56
    %60 = vset.pattern.permute.xlu0 0
    %61 = vperm.xlu0 %60, %v39
    %v62 = vpop.permute.xlu0 %61
    %65 = vset.pattern.permute.xlu0 0
    %66 = vperm.xlu0 %65, %v40
    %v67 = vpop.permute.xlu0 %66
    %70 = vset.pattern.permute.xlu0 0
    %71 = vperm.xlu0 %70, %v41
    %v72 = vpop.permute.xlu0 %71
    %75 = vset.pattern.permute.xlu0 0
    %76 = vperm.xlu0 %75, %v42
    %v77 = vpop.permute.xlu0 %76
    %80 = vset.pattern.permute.xlu0 0
    %81 = vperm.xlu0 %80, %v43
    %v82 = vpop.permute.xlu0 %81
    %85 = vset.pattern.permute.xlu0 0
    %86 = vperm.xlu0 %85, %v44
    %v87 = vpop.permute.xlu0 %86
    %90 = vset.pattern.permute.xlu0 0
    %91 = vperm.xlu0 %90, %v45
    %v92 = vpop.permute.xlu0 %91
    %95 = vset.pattern.permute.xlu0 0
    %96 = vperm.xlu0 %95, %v46
    %v97 = vpop.permute.xlu0 %96
    %100 = vset.pattern.permute.xlu0 0
    %101 = vperm.xlu0 %100, %v47
    %v102 = vpop.permute.xlu0 %101
    %105 = vset.pattern.permute.xlu0 0
    %106 = vperm.xlu0 %105, %v48
    %v107 = vpop.permute.xlu0 %106
    %110 = vset.pattern.permute.xlu0 0
    %111 = vperm.xlu0 %110, %v49
    %v112 = vpop.permute.xlu0 %111
    %115 = vset.pattern.permute.xlu0 0
    %116 = vperm.xlu0 %115, %v50
    %v117 = vpop.permute.xlu0 %116
    %120 = vset.pattern.permute.xlu0 0
    %121 = vperm.xlu0 %120, %v51
    %v122 = vpop.permute.xlu0 %121
    %125 = vset.pattern.permute.xlu0 0
    %126 = vperm.xlu0 %125, %v52
    %v127 = vpop.permute.xlu0 %126
    %130 = vset.pattern.permute.xlu0 0
    %131 = vperm.xlu0 %130, %v53
    %v132 = vpop.permute.xlu0 %131
    %135 = vset.pattern.permute.xlu0 0
    %136 = vperm.xlu0 %135, %v22
    %v137 = vpop.permute.xlu0 %136
    %140 = vset.pattern.permute.xlu0 0
    %141 = vperm.xlu0 %140, %v23
    %v142 = vpop.permute.xlu0 %141
    %145 = vset.pattern.permute.xlu0 0
    %146 = vperm.xlu0 %145, %v24
    %v147 = vpop.permute.xlu0 %146
    %150 = vset.pattern.permute.xlu0 0
    %151 = vperm.xlu0 %150, %v25
    %v152 = vpop.permute.xlu0 %151
    %155 = vset.pattern.permute.xlu0 0
    %156 = vperm.xlu0 %155, %v26
    %v157 = vpop.permute.xlu0 %156
    %160 = vset.pattern.permute.xlu0 0
    %161 = vperm.xlu0 %160, %v27
    %v162 = vpop.permute.xlu0 %161
    %165 = vset.pattern.permute.xlu0 0
    %166 = vperm.xlu0 %165, %v28
    %v167 = vpop.permute.xlu0 %166
    %170 = vset.pattern.permute.xlu0 0
    %171 = vperm.xlu0 %170, %v29
    %v172 = vpop.permute.xlu0 %171
    %175 = vset.pattern.permute.xlu0 0
    %176 = vperm.xlu0 %175, %v30
    %v177 = vpop.permute.xlu0 %176
    %180 = vset.pattern.permute.xlu0 0
    %181 = vperm.xlu0 %180, %v31
    %v182 = vpop.permute.xlu0 %181
    %185 = vset.pattern.permute.xlu0 0
    %186 = vperm.xlu0 %185, %v32
    %v187 = vpop.permute.xlu0 %186
    %190 = vset.pattern.permute.xlu0 0
    %191 = vperm.xlu0 %190, %v33
    %v192 = vpop.permute.xlu0 %191
    %195 = vset.pattern.permute.xlu0 0
    %196 = vperm.xlu0 %195, %v34
    %v197 = vpop.permute.xlu0 %196
    %200 = vset.pattern.permute.xlu0 0
    %201 = vperm.xlu0 %200, %v35
    %v202 = vpop.permute.xlu0 %201
    %205 = vset.pattern.permute.xlu0 0
    %206 = vperm.xlu0 %205, %v36
    %v207 = vpop.permute.xlu0 %206
    %210 = vset.pattern.permute.xlu0 0
    %211 = vperm.xlu0 %210, %v37
    %v212 = vpop.permute.xlu0 %211
    %v214 = vlaneseq
    %v215 = vshrl.u32 %v214, 7
    %v216 = vsub.s32 0, %v215
    %v217 = vrot.slane %v21, %v216
    %v218 = vmul.f32 %v137, %v217
    %v219 = vmul.f32 %v142, %v217
    %v220 = vmul.f32 %v147, %v217
    %v221 = vmul.f32 %v152, %v217
    %v222 = vmul.f32 %v157, %v217
    %v223 = vmul.f32 %v162, %v217
    %v224 = vmul.f32 %v167, %v217
    %v225 = vmul.f32 %v172, %v217
    %v226 = vmul.f32 %v177, %v217
    %v227 = vmul.f32 %v182, %v217
    %v228 = vmul.f32 %v187, %v217
    %v229 = vmul.f32 %v192, %v217
    %v230 = vmul.f32 %v197, %v217
    %v231 = vmul.f32 %v202, %v217
    %v232 = vmul.f32 %v207, %v217
    %v233 = vmul.f32 %v212, %v217
    %v234 = vadd.f32 %v57, %v218
    %v235 = vadd.f32 %v62, %v219
    %v236 = vadd.f32 %v67, %v220
    %v237 = vadd.f32 %v72, %v221
    %v238 = vadd.f32 %v77, %v222
    %v239 = vadd.f32 %v82, %v223
    %v240 = vadd.f32 %v87, %v224
    %v241 = vadd.f32 %v92, %v225
    %v242 = vadd.f32 %v97, %v226
    %v243 = vadd.f32 %v102, %v227
    %v244 = vadd.f32 %v107, %v228
    %v245 = vadd.f32 %v112, %v229
    %v246 = vadd.f32 %v117, %v230
    %v247 = vadd.f32 %v122, %v231
    %v248 = vadd.f32 %v127, %v232
    %v249 = vadd.f32 %v132, %v233
    %250 = vset.pattern.permute.xlu0 1
    %251 = vperm.xlu0 %250, %v22
    %v252 = vpop.permute.xlu0 %251
    %254 = vset.pattern.permute.xlu0 1
    %255 = vperm.xlu0 %254, %v23
    %v256 = vpop.permute.xlu0 %255
    %258 = vset.pattern.permute.xlu0 1
    %259 = vperm.xlu0 %258, %v24
    %v260 = vpop.permute.xlu0 %259
    %262 = vset.pattern.permute.xlu0 1
    %263 = vperm.xlu0 %262, %v25
    %v264 = vpop.permute.xlu0 %263
    %266 = vset.pattern.permute.xlu0 1
    %267 = vperm.xlu0 %266, %v26
    %v268 = vpop.permute.xlu0 %267
    %270 = vset.pattern.permute.xlu0 1
    %271 = vperm.xlu0 %270, %v27
    %v272 = vpop.permute.xlu0 %271
    %274 = vset.pattern.permute.xlu0 1
    %275 = vperm.xlu0 %274, %v28
    %v276 = vpop.permute.xlu0 %275
    %278 = vset.pattern.permute.xlu0 1
    %279 = vperm.xlu0 %278, %v29
    %v280 = vpop.permute.xlu0 %279
    %282 = vset.pattern.permute.xlu0 1
    %283 = vperm.xlu0 %282, %v30
    %v284 = vpop.permute.xlu0 %283
    %286 = vset.pattern.permute.xlu0 1
    %287 = vperm.xlu0 %286, %v31
    %v288 = vpop.permute.xlu0 %287
    %290 = vset.pattern.permute.xlu0 1
    %291 = vperm.xlu0 %290, %v32
    %v292 = vpop.permute.xlu0 %291
    %294 = vset.pattern.permute.xlu0 1
    %295 = vperm.xlu0 %294, %v33
    %v296 = vpop.permute.xlu0 %295
    %298 = vset.pattern.permute.xlu0 1
    %299 = vperm.xlu0 %298, %v34
    %v300 = vpop.permute.xlu0 %299
    %302 = vset.pattern.permute.xlu0 1
    %303 = vperm.xlu0 %302, %v35
    %v304 = vpop.permute.xlu0 %303
    %306 = vset.pattern.permute.xlu0 1
    %307 = vperm.xlu0 %306, %v36
    %v308 = vpop.permute.xlu0 %307
    %310 = vset.pattern.permute.xlu0 1
    %311 = vperm.xlu0 %310, %v37
    %v312 = vpop.permute.xlu0 %311
    %v314 = vlaneseq
    %v315 = vshrl.u32 %v314, 7
    %v316 = vsub.s32 1, %v315
    %v317 = vrot.slane %v21, %v316
    %v318 = vmul.f32 %v252, %v317
    %v319 = vmul.f32 %v256, %v317
    %v320 = vmul.f32 %v260, %v317
    %v321 = vmul.f32 %v264, %v317
    %v322 = vmul.f32 %v268, %v317
    %v323 = vmul.f32 %v272, %v317
    %v324 = vmul.f32 %v276, %v317
    %v325 = vmul.f32 %v280, %v317
    %v326 = vmul.f32 %v284, %v317
    %v327 = vmul.f32 %v288, %v317
    %v328 = vmul.f32 %v292, %v317
    %v329 = vmul.f32 %v296, %v317
    %v330 = vmul.f32 %v300, %v317
    %v331 = vmul.f32 %v304, %v317
    %v332 = vmul.f32 %v308, %v317
    %v333 = vmul.f32 %v312, %v317
    %v334 = vadd.f32 %v234, %v318
    %v335 = vadd.f32 %v235, %v319
    %v336 = vadd.f32 %v236, %v320
    %v337 = vadd.f32 %v237, %v321
    %v338 = vadd.f32 %v238, %v322
    %v339 = vadd.f32 %v239, %v323
    %v340 = vadd.f32 %v240, %v324
    %v341 = vadd.f32 %v241, %v325
    %v342 = vadd.f32 %v242, %v326
    %v343 = vadd.f32 %v243, %v327
    %v344 = vadd.f32 %v244, %v328
    %v345 = vadd.f32 %v245, %v329
    %v346 = vadd.f32 %v246, %v330
    %v347 = vadd.f32 %v247, %v331
    %v348 = vadd.f32 %v248, %v332
    %v349 = vadd.f32 %v249, %v333
    %v350 = vmax.f32 %v334, 0.0
    %v351 = vmax.f32 %v335, 0.0
    %v352 = vmax.f32 %v336, 0.0
    %v353 = vmax.f32 %v337, 0.0
    %v354 = vmax.f32 %v338, 0.0
    %v355 = vmax.f32 %v339, 0.0
    %v356 = vmax.f32 %v340, 0.0
    %v357 = vmax.f32 %v341, 0.0
    %v358 = vmax.f32 %v342, 0.0
    %v359 = vmax.f32 %v343, 0.0
    %v360 = vmax.f32 %v344, 0.0
    %v361 = vmax.f32 %v345, 0.0
    %v362 = vmax.f32 %v346, 0.0
    %v363 = vmax.f32 %v347, 0.0
    %v364 = vmax.f32 %v348, 0.0
    %v365 = vmax.f32 %v349, 0.0
    %v366 = vld [vmem:[%s3] sm:$0xff]
    %v367 = vld [vmem:[%s4] sm:$0xff]
    %369 = vset.pattern.permute.xlu0 0
    %370 = vperm.xlu0 %369, %v367
    %v371 = vpop.permute.xlu0 %370
    %373 = vmatprep.subr.mxu0 0.0
    %374 = vmatpush1.msra.mxu0 %v350
    %375 = vmatprep.subr.mxu0 0.0
    %376 = vmatpush1.msra.mxu0 %v351
    %377 = vmatprep.subr.mxu0 0.0
    %378 = vmatpush1.msra.mxu0 %v352
    %379 = vmatprep.subr.mxu0 0.0
    %380 = vmatpush1.msra.mxu0 %v353
    %381 = vmatprep.subr.mxu0 0.0
    %382 = vmatpush1.msra.mxu0 %v354
    %383 = vmatprep.subr.mxu0 0.0
    %384 = vmatpush1.msra.mxu0 %v355
    %385 = vmatprep.subr.mxu0 0.0
    %386 = vmatpush1.msra.mxu0 %v356
    %387 = vmatprep.subr.mxu0 0.0
    %388 = vmatpush1.msra.mxu0 %v357
    %389 = vmatprep.subr.mxu0 0.0
    %390 = vmatpush1.msra.mxu0 %v358
    %391 = vmatprep.subr.mxu0 0.0
    %392 = vmatpush1.msra.mxu0 %v359
    %393 = vmatprep.subr.mxu0 0.0
    %394 = vmatpush1.msra.mxu0 %v360
    %395 = vmatprep.subr.mxu0 0.0
    %396 = vmatpush1.msra.mxu0 %v361
    %397 = vmatprep.subr.mxu0 0.0
    %398 = vmatpush1.msra.mxu0 %v362
    %399 = vmatprep.subr.mxu0 0.0
    %400 = vmatpush1.msra.mxu0 %v363
    %401 = vmatprep.subr.mxu0 0.0
    %402 = vmatpush1.msra.mxu0 %v364
    %403 = vmatprep.subr.mxu0 0.0
    %404 = vmatpush1.msra.mxu0 %v365
    %405 = vmatprep.subr.mxu0 0.0
    %406 = vmatpush1.msra.mxu0 0.0
    %407 = vmatprep.subr.mxu0 0.0
    %408 = vmatpush1.msra.mxu0 0.0
    %409 = vmatprep.subr.mxu0 0.0
    %410 = vmatpush1.msra.mxu0 0.0
    %411 = vmatprep.subr.mxu0 0.0
    %412 = vmatpush1.msra.mxu0 0.0
    %413 = vmatprep.subr.mxu0 0.0
    %414 = vmatpush1.msra.mxu0 0.0
    %415 = vmatprep.subr.mxu0 0.0
    %416 = vmatpush1.msra.mxu0 0.0
    %417 = vmatprep.subr.mxu0 0.0
    %418 = vmatpush1.msra.mxu0 0.0
    %419 = vmatprep.subr.mxu0 0.0
    %420 = vmatpush1.msra.mxu0 0.0
    %421 = vmatprep.subr.mxu0 0.0
    %422 = vmatpush1.msra.mxu0 0.0
    %423 = vmatprep.subr.mxu0 0.0
    %424 = vmatpush1.msra.mxu0 0.0
    %425 = vmatprep.subr.mxu0 0.0
    %426 = vmatpush1.msra.mxu0 0.0
    %427 = vmatprep.subr.mxu0 0.0
    %428 = vmatpush1.msra.mxu0 0.0
    %429 = vmatprep.subr.mxu0 0.0
    %430 = vmatpush1.msra.mxu0 0.0
    %431 = vmatprep.subr.mxu0 0.0
    %432 = vmatpush1.msra.mxu0 0.0
    %433 = vmatprep.subr.mxu0 0.0
    %434 = vmatpush1.msra.mxu0 0.0
    %435 = vmatprep.subr.mxu0 0.0
    %436 = vmatpush1.msra.mxu0 0.0
    %437 = vmatprep.mubr.f32.mxu0 0.0
    %438 = vmatmul.mubr.f32.gmra.mrb[0].mxu0 %v366
    %v439 = vpop.f32.mrb[0].mxu0
    %v440 = vadd.f32 %v371, %v439
    %v441 = vpop.f32.mrb[0].mxu0
    %442 = vdwg.mxu0
    %443 = vst [vmem:[#allocation2] sm:$0xff] %v440
    // Predicated region
    $region22: #{tpu_custom_call.1} parent=1 // pred_check
      _
    $region23: #{tpu_custom_call.1} parent=1 // pred_check_branch
      %445 = sbr.rel (0) target = $region25
    $region24: #{tpu_custom_call.1} parent=1 // pred_region
      %s447 = ssub.s32 128, 128
      %448 = vsyncadd [#allocation3], %s447
      %s450 = sshll.u32 [#allocation2], 4
      %s451 = int_to_ptr.vmem [resolvable:$true] %s450
      %453 = dma.vmem_to_hbm [thread:$0]  %s451, 128, %s5, [#allocation3]
    $region25: #{tpu_custom_call.1} parent=1 // pred_fallthru
      _
    // Predicated region
    $region26: #{tpu_custom_call.1} parent=1 // pred_check
      _
    $region27: #{tpu_custom_call.1} parent=1 // pred_check_branch
      %455 = sbr.rel (0) target = $region29
    $region28: #{tpu_custom_call.1} parent=1 // pred_region
      %456 = dma.done [#allocation3], 128
    $region29: #{tpu_custom_call.1} parent=1 // pred_fallthru
      _
    %457 = vsyncpa [#allocation3], 1

</llo_original>
